<compile_context>
chip_gen: v7x
topology: tpu7x:2x2x1
jax: 0.10.0
libtpu: 0.0.40
codegen_flags: <defaults>
</compile_context>

<pallas_src>
import math

import jax
import jax.numpy as jnp
from jax.experimental import pallas as pl
from jax.experimental.pallas import tpu as pltpu


def _round_up(a, b):
    return (a + b - 1) // b * b


def _default_vmem_budget_bytes():
    """Per-generation VMEM budget: ~3/4 of physical per-core VMEM
    (v5e/v6e: 128 MiB -> 96 MiB, v7x: 64 MiB/TC -> 48 MiB). Conservative
    48 MiB fallback if the hardware query is unavailable."""
    try:
        info = pltpu.get_tpu_info()
        cap = None
        for name in ("vmem_capacity_bytes", "vmem_bytes", "vmem_size_bytes"):
            cap = getattr(info, name, None)
            if cap:
                break
        if cap:
            return int(cap) * 3 // 4
    except Exception:
        pass
    return 48 * 1024 * 1024


def _make_kernel(G, gin_p, gout_p, has_bias):
    # G is a static Python int (small for the DINOv2-style usage): the group
    # loop is unrolled.  Each group is one independent MXU matmul whose f32
    # result is bias-added, downcast and stored lane-dense immediately.
    def _body(x_ref, w_ref, b_ref, o_ref):
        for g in range(G):
            xg = x_ref[:, g * gin_p:(g + 1) * gin_p]          # aligned view
            acc = jnp.dot(xg, w_ref[g], preferred_element_type=jnp.float32)
            if has_bias:
                acc = acc + b_ref[:, g * gout_p:(g + 1) * gout_p]
            o_ref[:, g * gout_p:(g + 1) * gout_p] = acc.astype(o_ref.dtype)

    if has_bias:
        def kernel(x_ref, w_ref, b_ref, o_ref):
            _body(x_ref, w_ref, b_ref, o_ref)
    else:
        def kernel(x_ref, w_ref, o_ref):
            _body(x_ref, w_ref, None, o_ref)
    return kernel


def grouped_linear(x, weight, bias=None, *, tm=1024, vmem_budget_bytes=None):
    """x: (..., in_features); weight: (G, gin, gout); bias: (G, gout) or None."""
    G, gin, gout = weight.shape
    in_features = G * gin
    out_features = G * gout
    assert x.shape[-1] == in_features, "last dim of x must equal G*gin"

    lead = x.shape[:-1]
    x2d = x.reshape(-1, in_features)              # free row-major reshape
    M = x2d.shape[0]
    has_bias = bias is not None

    itemsize = jnp.dtype(x.dtype).itemsize
    budget = (vmem_budget_bytes if vmem_budget_bytes is not None
              else _default_vmem_budget_bytes())

    # Lane-align the per-group feature dims so in-kernel slices are zero-cost
    # views and per-group stores are unmasked lane-dense.
    gin_p = _round_up(gin, 128)
    gout_p = _round_up(gout, 128)
    in_p = G * gin_p
    out_p = G * gout_p

    # Rough VMEM footprint for a row tile of t rows:
    #   activations double-buffered, weight + bias single-buffered (Buffered(1)).
    def footprint(t):
        act = 2 * t * (in_p + out_p) * itemsize
        wgt = G * gin_p * gout_p * itemsize
        bia = out_p * 4 if has_bias else 0
        return act + wgt + bia

    # Row-tile alignment: dtype sublane-packing factor (f32:8, bf16:16, i8:32);
    # multiples of 256 when M is large to keep the 256x256 MXUs full.
    packing = 8 * max(1, 4 // itemsize)
    row_align = 256 if M >= 512 else packing

    tm_eff = min(_round_up(max(tm, row_align), row_align),
                 _round_up(M, row_align))
    while tm_eff > row_align and footprint(tm_eff) > budget:
        tm_eff = max(row_align, _round_up(tm_eff // 2, row_align))
    # TODO(synk): no K/N weight-tiling fallback if even the minimal row tile +
    # resident weight exceeds VMEM (huge G*gin*gout); would need a 2nd grid axis.

    # Give v7x's 2 TensorCores at least one row tile each ("parallel" axis);
    # a no-op perf-wise on single-TC v5e/v6e.
    if _round_up(M, tm_eff) // tm_eff < 2 and tm_eff > row_align:
        half = max(row_align, _round_up(tm_eff // 2, row_align))
        if _round_up(M, half) // half >= 2:
            tm_eff = half
    M_pad = _round_up(M, tm_eff)

    # ---- wrapper-side layout plumbing (pads are pure layout, no compute) ----
    if gin_p != gin:
        x2d = jnp.pad(x2d.reshape(M, G, gin),
                      ((0, 0), (0, 0), (0, gin_p - gin))).reshape(M, in_p)
    if M_pad != M:
        x2d = jnp.pad(x2d, ((0, M_pad - M), (0, 0)))

    # Explicit MXU-input policy: weights run in the activation dtype,
    # accumulation stays f32 (matches common mixed-precision practice).
    w = weight if weight.dtype == x.dtype else weight.astype(x.dtype)
    if gin_p != gin or gout_p != gout:
        w = jnp.pad(w, ((0, 0), (0, gin_p - gin), (0, gout_p - gout)))

    inputs = [x2d, w]
    in_specs = [
        # x: one lane-dense (tm, in_p) row tile per step (double-buffered).
        pl.BlockSpec((tm_eff, in_p), lambda i: (i, 0)),
        # weight: whole tensor, resident in VMEM, single-buffered.
        pl.BlockSpec((G, gin_p, gout_p), lambda i: (0, 0, 0),
                     pipeline_mode=pl.Buffered(1)),
    ]
    if has_bias:
        b = bias.astype(jnp.float32)                       # f32 end-to-end
        if gout_p != gout:
            b = jnp.pad(b, ((0, 0), (0, gout_p - gout)))
        b = b.reshape(1, out_p)
        inputs.append(b)
        in_specs.append(pl.BlockSpec((1, out_p), lambda i: (0, 0),
                                     pipeline_mode=pl.Buffered(1)))

    grid = (M_pad // tm_eff,)

    # VMEM limit follows the tile choice instead of contradicting it.
    vmem_limit = int(min(max(budget, footprint(tm_eff) + (2 << 20)),
                         110 * 1024 * 1024))

    cost = pl.CostEstimate(
        flops=2 * M_pad * G * gin_p * gout_p,
        transcendentals=0,
        bytes_accessed=(M_pad * in_p * itemsize
                        + G * gin_p * gout_p * itemsize
                        + (out_p * 4 if has_bias else 0)
                        + M_pad * out_p * itemsize),
    )

    out2d = pl.pallas_call(
        _make_kernel(G, gin_p, gout_p, has_bias),
        out_shape=jax.ShapeDtypeStruct((M_pad, out_p), x.dtype),
        grid_spec=pltpu.PrefetchScalarGridSpec(
            num_scalar_prefetch=0,
            grid=grid,
            in_specs=in_specs,
            out_specs=pl.BlockSpec((tm_eff, out_p), lambda i: (i, 0)),
        ),
        compiler_params=pltpu.CompilerParams(
            dimension_semantics=("parallel",),
            vmem_limit_bytes=vmem_limit,
        ),
        cost_estimate=cost,
    )(*inputs)

    # ---- undo row / feature padding ----
    if M_pad != M:
        out2d = out2d[:M]
    if gout_p != gout:
        out2d = out2d.reshape(M, G, gout_p)[:, :, :gout].reshape(M, out_features)
    return out2d.reshape(*lead, out_features)


def init_grouped_linear_params(key, in_features, out_features, num_groups,
                               bias=True, dtype=jnp.float32):
    """xavier_uniform_-style init matching nn.init semantics on a (G, gin, gout)
    tensor: fan_in = gin*gout, fan_out = G*gout; bias initialized to zeros."""
    assert in_features % num_groups == 0
    assert out_features % num_groups == 0
    gin = in_features // num_groups
    gout = out_features // num_groups
    fan_in = gin * gout
    fan_out = num_groups * gout
    bound = math.sqrt(6.0 / (fan_in + fan_out))
    w = jax.random.uniform(key, (num_groups, gin, gout), dtype=dtype,
                           minval=-bound, maxval=bound)
    b = jnp.zeros((num_groups, gout), dtype=dtype) if bias else None
    return w, b


def _reference_grouped_linear(x, weight, bias):
    """Pure-JAX reference mirroring the PyTorch forward (bmm over groups)."""
    G, gin, gout = weight.shape
    lead = x.shape[:-1]
    x2d = x.reshape(-1, G, gin)
    out = jnp.einsum("mgi,gio->mgo", x2d, weight)
    if bias is not None:
        out = out + bias[None, :, :]
    return out.reshape(*lead, G * gout)


if __name__ == "__main__":
    key = jax.random.PRNGKey(0)
    k_x, k_w, k_b, k_x2, k_w2 = jax.random.split(key, 5)

    # Demo shapes consistent with the module: (batch, seq, in_features).
    batch, seq = 2, 8
    in_features, out_features, num_groups = 32, 32, 4

    x = jax.random.normal(k_x, (batch, seq, in_features), dtype=jnp.float32)
    weight, bias = init_grouped_linear_params(
        k_w, in_features, out_features, num_groups, bias=True)
    # Use a nonzero bias in the test so the bias add is actually exercised.
    bias = bias + 0.1 * jax.random.normal(k_b, bias.shape, dtype=jnp.float32)

    run = jax.jit(grouped_linear)
    out = run(x, weight, bias)
    jax.block_until_ready(out)

    ref = _reference_grouped_linear(x, weight, bias)
    assert out.shape == (batch, seq, out_features)
    assert jnp.allclose(out, ref, atol=1e-5, rtol=1e-5), "bias path mismatch"

    # Secondary check: ragged row count (padding path) + bias-free variant.
    x2 = jax.random.normal(k_x2, (5, 64), dtype=jnp.float32)
    w2, _ = init_grouped_linear_params(k_w2, 64, 32, 2, bias=False)
    run2 = jax.jit(lambda a, w: grouped_linear(a, w, None))
    out2 = run2(x2, w2)
    jax.block_until_ready(out2)
    ref2 = _reference_grouped_linear(x2, w2, None)
    assert out2.shape == (5, 32)
    assert jnp.allclose(out2, ref2, atol=1e-5, rtol=1e-5), "no-bias mismatch"

    print("KERNEL_OK")
</pallas_src>

<mosaic_0001>
module attributes {stable_mosaic.version = 11 : i64} {
  func.func @kernel(%arg0: i32, %arg1: memref<8x512xf32, #tpu.memory_space<vmem>>, %arg2: memref<4x128x128xf32, #tpu.memory_space<vmem>>, %arg3: memref<1x512xf32, #tpu.memory_space<vmem>>, %arg4: memref<8x512xf32, #tpu.memory_space<vmem>>) attributes {dimension_semantics = [#tpu.dimension_semantics<parallel>], iteration_bounds = array<i64: 2>, scalar_prefetch = 0 : i64, scratch_operands = 0 : i64, tpu.core_type = #tpu.core_type<tc>, window_params = [{transform_indices = @transform_0, window_bounds = array<i64: 8, 512>}, {pipeline_mode = #tpu.pipeline_mode<synchronous>, transform_indices = @transform_1, window_bounds = array<i64: 4, 128, 128>}, {pipeline_mode = #tpu.pipeline_mode<synchronous>, transform_indices = @transform_2, window_bounds = array<i64: 1, 512>}, {transform_indices = @transform_3, window_bounds = array<i64: 8, 512>}]} {
    %c0 = arith.constant 0 : index
    %c0_0 = arith.constant 0 : index
    %0 = vector.load %arg1[%c0, %c0_0] : memref<8x512xf32, #tpu.memory_space<vmem>>, vector<8x128xf32>
    %c0_1 = arith.constant 0 : index
    %c0_2 = arith.constant 0 : index
    %c0_3 = arith.constant 0 : index
    %1 = vector.load %arg2[%c0_1, %c0_2, %c0_3] : memref<4x128x128xf32, #tpu.memory_space<vmem>>, vector<1x128x128xf32>
    %2 = vector.shape_cast %1 : vector<1x128x128xf32> to vector<128x128xf32>
    %cst = arith.constant dense<0.000000e+00> : vector<8x128xf32>
    %3 = tpu.matmul %0, %2, %cst {dimension_numbers = #tpu.dot_dimension_numbers<[1], [0], [0], [1], [0, 0, 1, 1], [], []>} : vector<8x128xf32>, vector<128x128xf32>, vector<8x128xf32> -> vector<8x128xf32>
    %c0_4 = arith.constant 0 : index
    %c0_5 = arith.constant 0 : index
    %4 = vector.load %arg3[%c0_4, %c0_5] : memref<1x512xf32, #tpu.memory_space<vmem>>, vector<1x128xf32>
    %5 = vector.broadcast %4 : vector<1x128xf32> to vector<8x128xf32>
    %6 = arith.addf %3, %5 : vector<8x128xf32>
    %c0_6 = arith.constant 0 : index
    %c0_7 = arith.constant 0 : index
    %7 = vector.load %arg4[%c0_6, %c0_7] : memref<8x512xf32, #tpu.memory_space<vmem>>, vector<8x128xf32>
    tpu.vector_store %arg4[%c0_6, %c0_7], %6 {strides = array<i32>} : memref<8x512xf32, #tpu.memory_space<vmem>>, vector<8x128xf32>,
    %c0_8 = arith.constant 0 : index
    %c128 = arith.constant 128 : index
    %8 = vector.load %arg1[%c0_8, %c128] : memref<8x512xf32, #tpu.memory_space<vmem>>, vector<8x128xf32>
    %c1 = arith.constant 1 : index
    %c0_9 = arith.constant 0 : index
    %c0_10 = arith.constant 0 : index
    %9 = vector.load %arg2[%c1, %c0_9, %c0_10] : memref<4x128x128xf32, #tpu.memory_space<vmem>>, vector<1x128x128xf32>
    %10 = vector.shape_cast %9 : vector<1x128x128xf32> to vector<128x128xf32>
    %cst_11 = arith.constant dense<0.000000e+00> : vector<8x128xf32>
    %11 = tpu.matmul %8, %10, %cst_11 {dimension_numbers = #tpu.dot_dimension_numbers<[1], [0], [0], [1], [0, 0, 1, 1], [], []>} : vector<8x128xf32>, vector<128x128xf32>, vector<8x128xf32> -> vector<8x128xf32>
    %c0_12 = arith.constant 0 : index
    %c128_13 = arith.constant 128 : index
    %12 = vector.load %arg3[%c0_12, %c128_13] : memref<1x512xf32, #tpu.memory_space<vmem>>, vector<1x128xf32>
    %13 = vector.broadcast %12 : vector<1x128xf32> to vector<8x128xf32>
    %14 = arith.addf %11, %13 : vector<8x128xf32>
    %c0_14 = arith.constant 0 : index
    %c128_15 = arith.constant 128 : index
    %15 = vector.load %arg4[%c0_14, %c128_15] : memref<8x512xf32, #tpu.memory_space<vmem>>, vector<8x128xf32>
    tpu.vector_store %arg4[%c0_14, %c128_15], %14 {strides = array<i32>} : memref<8x512xf32, #tpu.memory_space<vmem>>, vector<8x128xf32>,
    %c0_16 = arith.constant 0 : index
    %c256 = arith.constant 256 : index
    %16 = vector.load %arg1[%c0_16, %c256] : memref<8x512xf32, #tpu.memory_space<vmem>>, vector<8x128xf32>
    %c2 = arith.constant 2 : index
    %c0_17 = arith.constant 0 : index
    %c0_18 = arith.constant 0 : index
    %17 = vector.load %arg2[%c2, %c0_17, %c0_18] : memref<4x128x128xf32, #tpu.memory_space<vmem>>, vector<1x128x128xf32>
    %18 = vector.shape_cast %17 : vector<1x128x128xf32> to vector<128x128xf32>
    %cst_19 = arith.constant dense<0.000000e+00> : vector<8x128xf32>
    %19 = tpu.matmul %16, %18, %cst_19 {dimension_numbers = #tpu.dot_dimension_numbers<[1], [0], [0], [1], [0, 0, 1, 1], [], []>} : vector<8x128xf32>, vector<128x128xf32>, vector<8x128xf32> -> vector<8x128xf32>
    %c0_20 = arith.constant 0 : index
    %c256_21 = arith.constant 256 : index
    %20 = vector.load %arg3[%c0_20, %c256_21] : memref<1x512xf32, #tpu.memory_space<vmem>>, vector<1x128xf32>
    %21 = vector.broadcast %20 : vector<1x128xf32> to vector<8x128xf32>
    %22 = arith.addf %19, %21 : vector<8x128xf32>
    %c0_22 = arith.constant 0 : index
    %c256_23 = arith.constant 256 : index
    %23 = vector.load %arg4[%c0_22, %c256_23] : memref<8x512xf32, #tpu.memory_space<vmem>>, vector<8x128xf32>
    tpu.vector_store %arg4[%c0_22, %c256_23], %22 {strides = array<i32>} : memref<8x512xf32, #tpu.memory_space<vmem>>, vector<8x128xf32>,
    %c0_24 = arith.constant 0 : index
    %c384 = arith.constant 384 : index
    %24 = vector.load %arg1[%c0_24, %c384] : memref<8x512xf32, #tpu.memory_space<vmem>>, vector<8x128xf32>
    %c3 = arith.constant 3 : index
    %c0_25 = arith.constant 0 : index
    %c0_26 = arith.constant 0 : index
    %25 = vector.load %arg2[%c3, %c0_25, %c0_26] : memref<4x128x128xf32, #tpu.memory_space<vmem>>, vector<1x128x128xf32>
    %26 = vector.shape_cast %25 : vector<1x128x128xf32> to vector<128x128xf32>
    %cst_27 = arith.constant dense<0.000000e+00> : vector<8x128xf32>
    %27 = tpu.matmul %24, %26, %cst_27 {dimension_numbers = #tpu.dot_dimension_numbers<[1], [0], [0], [1], [0, 0, 1, 1], [], []>} : vector<8x128xf32>, vector<128x128xf32>, vector<8x128xf32> -> vector<8x128xf32>
    %c0_28 = arith.constant 0 : index
    %c384_29 = arith.constant 384 : index
    %28 = vector.load %arg3[%c0_28, %c384_29] : memref<1x512xf32, #tpu.memory_space<vmem>>, vector<1x128xf32>
    %29 = vector.broadcast %28 : vector<1x128xf32> to vector<8x128xf32>
    %30 = arith.addf %27, %29 : vector<8x128xf32>
    %c0_30 = arith.constant 0 : index
    %c384_31 = arith.constant 384 : index
    %31 = vector.load %arg4[%c0_30, %c384_31] : memref<8x512xf32, #tpu.memory_space<vmem>>, vector<8x128xf32>
    tpu.vector_store %arg4[%c0_30, %c384_31], %30 {strides = array<i32>} : memref<8x512xf32, #tpu.memory_space<vmem>>, vector<8x128xf32>,
    return
  }
  func.func @transform_0(%arg0: i32) -> (i32, i32) {
    %c0_i32 = arith.constant 0 : i32
    %c0_i32_0 = arith.constant 0 : i32
    return %arg0, %c0_i32 : i32, i32
  }
  func.func @transform_1(%arg0: i32) -> (i32, i32, i32) {
    %c0_i32 = arith.constant 0 : i32
    %c0_i32_0 = arith.constant 0 : i32
    %c0_i32_1 = arith.constant 0 : i32
    %c0_i32_2 = arith.constant 0 : i32
    return %c0_i32, %c0_i32_0, %c0_i32_1 : i32, i32, i32
  }
  func.func @transform_2(%arg0: i32) -> (i32, i32) {
    %c0_i32 = arith.constant 0 : i32
    %c0_i32_0 = arith.constant 0 : i32
    %c0_i32_1 = arith.constant 0 : i32
    return %c0_i32, %c0_i32_0 : i32, i32
  }
  func.func @transform_3(%arg0: i32) -> (i32, i32) {
    %c0_i32 = arith.constant 0 : i32
    %c0_i32_0 = arith.constant 0 : i32
    return %arg0, %c0_i32 : i32, i32
  }
}

</mosaic_0001>

<llo_original>
// kernel: grouped_linear.1
$region0: #{grouped_linear.1}
  #allocation0 [shape = 'u32[]', space=smem, size = 0x4, offset = 0x4, fixed_abs, tag = 'smem constant byte address 0x4 - core index']
  #allocation1 [shape = 'u32[144,128]{1,0:T(1,128)}', space=vmem, size = 0x12000, scoped, tag = 'internal scratch']
  %s0 = inlined_call_operand.vmem [shape: f32[16,512], index: 0, kind: input, shape index: {}]
  %s1 = inlined_call_operand.vmem [shape: f32[4,128,128], index: 1, kind: input, shape index: {}]
  %s2 = inlined_call_operand.vmem [shape: f32[1,512], index: 2, kind: input, shape index: {}]
  %s3 = inlined_call_operand.vmem [shape: f32[16,512], index: 3, kind: output, shape index: {}]
  %s4 = sld [smem:[#allocation0]]
  $region45: #{grouped_linear.1} parent=0
    _
  %s6 = ssub.s32 1, %s4
  %s7 = scalar_select 0, %s6, %s4
  loop: start=0, step=1, limit=4
  $region2: #{grouped_linear.1} parent=0 // loop_pre_header
    _
  $region3: #{grouped_linear.1} parent=0 // loop_header
    %s9 = sphi 0, %s13
    %p10 = scmp.ge.s32.totalorder %s9, 4
    %s19 = sphi 0, %s21
    %s22 = sphi 0, %s19
    %s23 = sphi 0, %s22
    %s39 = sphi 0, %s23
    %s43 = sphi 0, %s43
    %s45 = sphi 0, %s43
    %s46 = sphi 0, %s45
    %s60 = sphi 0, %s46
    %s64 = sphi 0, %s64
    %s66 = sphi 0, %s64
    %s67 = sphi 0, %s66
    %s81 = sphi 0, %s67
    %s87 = sphi 0, %s89
    %s90 = sphi 0, %s87
    %s91 = sphi 0, %s90
    %s107 = sphi 0, %s91
  $region4: #{grouped_linear.1} parent=0 // loop_header_branch
    %12 = sbr.rel (%p10) target = $region8
  $region5: #{grouped_linear.1} parent=0 // loop_body
    %s14 = ssub.s32 %s9, 1
    %s15 = ssub.s32 %s9, 2
    %s16 = sadd.s32 %s9, 1
    %s17 = ssub.s32 %s9, %s16
    %p18 = scmp.eq.s32.totalorder %s17, 0
    %s20 = sadd.s32 %s19, 1
    %s21 = scalar_select %p18, %s19, %s20
    %p24 = pneg %p18
    %p25 = scmp.eq.s32.totalorder %s9, 1
    %p26 = por %p24, %p25
    %p27 = scmp.ne.s32.totalorder %s19, %s22
    %p28 = scmp.eq.s32.totalorder %s9, 0
    %p29 = por %p27, %p28
    %p30 = scmp.ne.s32.totalorder %s19, %s22
    %p31 = scmp.eq.s32.totalorder %s14, 1
    %p32 = por %p30, %p31
    %p33 = scmp.ne.s32.totalorder %s22, %s23
    %p34 = scmp.eq.s32.totalorder %s14, 0
    %p35 = por %p33, %p34
    %p36 = scmp.ne.s32.totalorder %s22, %s23
    %p37 = scmp.eq.s32.totalorder %s15, 1
    %p38 = por %p36, %p37
    %p40 = scmp.ne.s32.totalorder %s23, %s39
    %p41 = scmp.eq.s32.totalorder %s15, 0
    %p42 = por %p40, %p41
    %s44 = sadd.s32 %s43, 1
    %p47 = scmp.eq.s32.totalorder %s9, 1
    %p48 = scmp.ne.s32.totalorder %s43, %s45
    %p49 = scmp.eq.s32.totalorder %s9, 0
    %p50 = por %p48, %p49
    %p51 = scmp.ne.s32.totalorder %s43, %s45
    %p52 = scmp.eq.s32.totalorder %s14, 1
    %p53 = por %p51, %p52
    %p54 = scmp.ne.s32.totalorder %s45, %s46
    %p55 = scmp.eq.s32.totalorder %s14, 0
    %p56 = por %p54, %p55
    %p57 = scmp.ne.s32.totalorder %s45, %s46
    %p58 = scmp.eq.s32.totalorder %s15, 1
    %p59 = por %p57, %p58
    %p61 = scmp.ne.s32.totalorder %s46, %s60
    %p62 = scmp.eq.s32.totalorder %s15, 0
    %p63 = por %p61, %p62
    %s65 = sadd.s32 %s64, 1
    %p68 = scmp.eq.s32.totalorder %s9, 1
    %p69 = scmp.ne.s32.totalorder %s64, %s66
    %p70 = scmp.eq.s32.totalorder %s9, 0
    %p71 = por %p69, %p70
    %p72 = scmp.ne.s32.totalorder %s64, %s66
    %p73 = scmp.eq.s32.totalorder %s14, 1
    %p74 = por %p72, %p73
    %p75 = scmp.ne.s32.totalorder %s66, %s67
    %p76 = scmp.eq.s32.totalorder %s14, 0
    %p77 = por %p75, %p76
    %p78 = scmp.ne.s32.totalorder %s66, %s67
    %p79 = scmp.eq.s32.totalorder %s15, 1
    %p80 = por %p78, %p79
    %p82 = scmp.ne.s32.totalorder %s67, %s81
    %p83 = scmp.eq.s32.totalorder %s15, 0
    %p84 = por %p82, %p83
    %s85 = ssub.s32 %s9, %s16
    %p86 = scmp.eq.s32.totalorder %s85, 0
    %s88 = sadd.s32 %s87, 1
    %s89 = scalar_select %p86, %s87, %s88
    %p92 = pneg %p86
    %p93 = scmp.eq.s32.totalorder %s9, 1
    %p94 = por %p92, %p93
    %p95 = scmp.ne.s32.totalorder %s87, %s90
    %p96 = scmp.eq.s32.totalorder %s9, 0
    %p97 = por %p95, %p96
    %p98 = scmp.ne.s32.totalorder %s87, %s90
    %p99 = scmp.eq.s32.totalorder %s14, 1
    %p100 = por %p98, %p99
    %p101 = scmp.ne.s32.totalorder %s90, %s91
    %p102 = scmp.eq.s32.totalorder %s14, 0
    %p103 = por %p101, %p102
    %p104 = scmp.ne.s32.totalorder %s90, %s91
    %p105 = scmp.eq.s32.totalorder %s15, 1
    %p106 = por %p104, %p105
    %p108 = scmp.ne.s32.totalorder %s91, %s107
    %p109 = scmp.eq.s32.totalorder %s15, 0
    %p110 = por %p108, %p109
    %p111 = scmp.le.s32.totalorder 1, %s9
    %p112 = scmp.lt.s32.totalorder %s9, 3
    %p113 = pnand %p111, %p112
    %p114 = pneg %p113
    // Predicated region
    $region9: #{grouped_linear.1} parent=5 // pred_check
      _
    $region10: #{grouped_linear.1} parent=5 // pred_check_branch
      %116 = sbr.rel (%p113) target = $region12
    $region11: #{grouped_linear.1} parent=5 // pred_region
      %s117 = ssub.s32 %s9, 1
      // Predicated region
      $region13: #{grouped_linear.1} parent=11 // pred_check
        %p118 = pneg %p56
      $region14: #{grouped_linear.1} parent=11 // pred_check_branch
        %120 = sbr.rel (%p118) target = $region16
      $region15: #{grouped_linear.1} parent=11 // pred_region
        _
      $region16: #{grouped_linear.1} parent=11 // pred_fallthru
        _
      // Predicated region
      $region17: #{grouped_linear.1} parent=11 // pred_check
        %p121 = pneg %p77
      $region18: #{grouped_linear.1} parent=11 // pred_check_branch
        %123 = sbr.rel (%p121) target = $region20
      $region19: #{grouped_linear.1} parent=11 // pred_region
        _
      $region20: #{grouped_linear.1} parent=11 // pred_fallthru
        _
    $region12: #{grouped_linear.1} parent=5 // pred_fallthru
      _
    %p124 = scmp.lt.s32.totalorder %s9, 2
    // Predicated region
    $region21: #{grouped_linear.1} parent=5 // pred_check
      %p125 = pneg %p124
    $region22: #{grouped_linear.1} parent=5 // pred_check_branch
      %127 = sbr.rel (%p125) target = $region24
    $region23: #{grouped_linear.1} parent=5 // pred_region
      // Predicated region
      $region25: #{grouped_linear.1} parent=23 // pred_check
        %p128 = pneg %p29
      $region26: #{grouped_linear.1} parent=23 // pred_check_branch
        %130 = sbr.rel (%p128) target = $region28
      $region27: #{grouped_linear.1} parent=23 // pred_region
        %p131 = scmp.lt.s32.totalorder %s9, 1
        %s132 = scalar_select %p131, %s9, 1
        %s133 = smul.addr %s132, 4
        %s134 = smul.addr %s133, 8
        %s135 = scalar_lea.vmem %s0, %s134
      $region28: #{grouped_linear.1} parent=23 // pred_fallthru
        _
    $region24: #{grouped_linear.1} parent=5 // pred_fallthru
      _
    %p136 = scmp.le.s32.totalorder 1, %s9
    %p137 = scmp.lt.s32.totalorder %s9, 3
    %p138 = pnand %p136, %p137
    %p139 = pneg %p138
    // Predicated region
    $region29: #{grouped_linear.1} parent=5 // pred_check
      _
    $region30: #{grouped_linear.1} parent=5 // pred_check_branch
      %141 = sbr.rel (%p138) target = $region32
    $region31: #{grouped_linear.1} parent=5 // pred_region
      %s142 = ssub.s32 %s9, 1
      %p143 = scmp.lt.s32.totalorder %s14, 1
      %s144 = scalar_select %p143, %s14, 1
      %s145 = smul.addr %s144, 4
      %s146 = smul.addr %s145, 8
      %s147 = scalar_lea.vmem %s0, %s146
      %p148 = pneg %p35
      %p149 = pneg %p32
      %p150 = pneg %p56
      %p151 = pneg %p53
      %p152 = pneg %p77
      %p153 = pneg %p74
      %p154 = pneg %p103
      %p155 = pneg %p100
      %p156 = scmp.lt.s32.totalorder %s14, 1
      %s157 = scalar_select %p156, %s14, 1
      %s158 = smul.addr %s157, 4
      %s159 = smul.addr %s158, 8
      %s160 = scalar_lea.vmem %s3, %s159
      %p161 = scmp.lt.s32.totalorder %s14, 1
      %s162 = scalar_select %p161, %s14, 1
      %s163 = smul.addr %s162, 4
      %s164 = smul.addr %s163, 8
      %s165 = scalar_lea.vmem %s0, %s164
      %p166 = scmp.lt.s32.totalorder %s14, 1
      %s167 = scalar_select %p166, %s14, 1
      %s168 = smul.addr %s167, 4
      %s169 = smul.addr %s168, 8
      %s170 = scalar_lea.vmem %s3, %s169
      %v171 = vld [vmem:[%s165] sm:$0xff]
      %v172 = vld [vmem:[%s1] sm:$0xff]
      %v173 = vld [vmem:[%s1 + $0x8] sm:$0xff]
      %v174 = vld [vmem:[%s1 + $0x10] sm:$0xff]
      %v175 = vld [vmem:[%s1 + $0x18] sm:$0xff]
      %v176 = vld [vmem:[%s1 + $0x20] sm:$0xff]
      %v177 = vld [vmem:[%s1 + $0x28] sm:$0xff]
      %v178 = vld [vmem:[%s1 + $0x30] sm:$0xff]
      %v179 = vld [vmem:[%s1 + $0x38] sm:$0xff]
      %v180 = vld [vmem:[%s1 + $0x40] sm:$0xff]
      %v181 = vld [vmem:[%s1 + $0x48] sm:$0xff]
      %v182 = vld [vmem:[%s1 + $0x50] sm:$0xff]
      %v183 = vld [vmem:[%s1 + $0x58] sm:$0xff]
      %v184 = vld [vmem:[%s1 + $0x60] sm:$0xff]
      %v185 = vld [vmem:[%s1 + $0x68] sm:$0xff]
      %v186 = vld [vmem:[%s1 + $0x70] sm:$0xff]
      %v187 = vld [vmem:[%s1 + $0x78] sm:$0xff]
      %v188 = vld [vmem:[%s2] sm:$0x1]
      %v190 = vlaneseq
      %v191 = vshrl.u32 %v190, 7
      %v192 = vsub.s32 0, %v191
      %v193 = vrot.slane %v188, %v192
      %195 = vmatprep.subr.mxu0 0.0
      %196 = vmatpush1.msra.mxu0 %v172
      %197 = vmatprep.subr.mxu0 0.0
      %198 = vmatpush1.msra.mxu0 %v173
      %199 = vmatprep.subr.mxu0 0.0
      %200 = vmatpush1.msra.mxu0 %v174
      %201 = vmatprep.subr.mxu0 0.0
      %202 = vmatpush1.msra.mxu0 %v175
      %203 = vmatprep.subr.mxu0 0.0
      %204 = vmatpush1.msra.mxu0 %v176
      %205 = vmatprep.subr.mxu0 0.0
      %206 = vmatpush1.msra.mxu0 %v177
      %207 = vmatprep.subr.mxu0 0.0
      %208 = vmatpush1.msra.mxu0 %v178
      %209 = vmatprep.subr.mxu0 0.0
      %210 = vmatpush1.msra.mxu0 %v179
      %211 = vmatprep.subr.mxu0 0.0
      %212 = vmatpush1.msra.mxu0 %v180
      %213 = vmatprep.subr.mxu0 0.0
      %214 = vmatpush1.msra.mxu0 %v181
      %215 = vmatprep.subr.mxu0 0.0
      %216 = vmatpush1.msra.mxu0 %v182
      %217 = vmatprep.subr.mxu0 0.0
      %218 = vmatpush1.msra.mxu0 %v183
      %219 = vmatprep.subr.mxu0 0.0
      %220 = vmatpush1.msra.mxu0 %v184
      %221 = vmatprep.subr.mxu0 0.0
      %222 = vmatpush1.msra.mxu0 %v185
      %223 = vmatprep.subr.mxu0 0.0
      %224 = vmatpush1.msra.mxu0 %v186
      %225 = vmatprep.subr.mxu0 0.0
      %226 = vmatpush1.msra.mxu0 %v187
      %227 = vmatprep.subr.mxu0 0.0
      %228 = vmatpush1.msra.mxu0 0.0
      %229 = vmatprep.subr.mxu0 0.0
      %230 = vmatpush1.msra.mxu0 0.0
      %231 = vmatprep.subr.mxu0 0.0
      %232 = vmatpush1.msra.mxu0 0.0
      %233 = vmatprep.subr.mxu0 0.0
      %234 = vmatpush1.msra.mxu0 0.0
      %235 = vmatprep.subr.mxu0 0.0
      %236 = vmatpush1.msra.mxu0 0.0
      %237 = vmatprep.subr.mxu0 0.0
      %238 = vmatpush1.msra.mxu0 0.0
      %239 = vmatprep.subr.mxu0 0.0
      %240 = vmatpush1.msra.mxu0 0.0
      %241 = vmatprep.subr.mxu0 0.0
      %242 = vmatpush1.msra.mxu0 0.0
      %243 = vmatprep.subr.mxu0 0.0
      %244 = vmatpush1.msra.mxu0 0.0
      %245 = vmatprep.subr.mxu0 0.0
      %246 = vmatpush1.msra.mxu0 0.0
      %247 = vmatprep.subr.mxu0 0.0
      %248 = vmatpush1.msra.mxu0 0.0
      %249 = vmatprep.subr.mxu0 0.0
      %250 = vmatpush1.msra.mxu0 0.0
      %251 = vmatprep.subr.mxu0 0.0
      %252 = vmatpush1.msra.mxu0 0.0
      %253 = vmatprep.subr.mxu0 0.0
      %254 = vmatpush1.msra.mxu0 0.0
      %255 = vmatprep.subr.mxu0 0.0
      %256 = vmatpush1.msra.mxu0 0.0
      %257 = vmatprep.subr.mxu0 0.0
      %258 = vmatpush1.msra.mxu0 0.0
      %259 = vmatprep.mubr.f32.mxu0 0.0
      %260 = vmatmul.mubr.f32.gmra.mrb[0].mxu0 %v171
      %v261 = vpop.f32.mrb[0].mxu0
      %v262 = vadd.f32 %v193, %v261
      %v263 = vpop.f32.mrb[0].mxu0
      %264 = vdwg.mxu0
      %265 = vst [vmem:[%s170] sm:$0xff] %v262
      %v266 = vld [vmem:[%s165 + $0x8] sm:$0xff]
      %s267 = scalar_lea.vmem %s1, 128
      %v268 = vld [vmem:[%s267] sm:$0xff]
      %v269 = vld [vmem:[%s267 + $0x8] sm:$0xff]
      %v270 = vld [vmem:[%s267 + $0x10] sm:$0xff]
      %v271 = vld [vmem:[%s267 + $0x18] sm:$0xff]
      %v272 = vld [vmem:[%s267 + $0x20] sm:$0xff]
      %v273 = vld [vmem:[%s267 + $0x28] sm:$0xff]
      %v274 = vld [vmem:[%s267 + $0x30] sm:$0xff]
      %v275 = vld [vmem:[%s267 + $0x38] sm:$0xff]
      %v276 = vld [vmem:[%s267 + $0x40] sm:$0xff]
      %v277 = vld [vmem:[%s267 + $0x48] sm:$0xff]
      %v278 = vld [vmem:[%s267 + $0x50] sm:$0xff]
      %v279 = vld [vmem:[%s267 + $0x58] sm:$0xff]
      %v280 = vld [vmem:[%s267 + $0x60] sm:$0xff]
      %v281 = vld [vmem:[%s267 + $0x68] sm:$0xff]
      %v282 = vld [vmem:[%s267 + $0x70] sm:$0xff]
      %v283 = vld [vmem:[%s267 + $0x78] sm:$0xff]
      %v284 = vld [vmem:[%s2 + $0x1] sm:$0x1]
      %v286 = vlaneseq
      %v287 = vshrl.u32 %v286, 7
      %v288 = vsub.s32 0, %v287
      %v289 = vrot.slane %v284, %v288
      %291 = vmatprep.subr.mxu0 0.0
      %292 = vmatpush1.msra.mxu0 %v268
      %293 = vmatprep.subr.mxu0 0.0
      %294 = vmatpush1.msra.mxu0 %v269
      %295 = vmatprep.subr.mxu0 0.0
      %296 = vmatpush1.msra.mxu0 %v270
      %297 = vmatprep.subr.mxu0 0.0
      %298 = vmatpush1.msra.mxu0 %v271
      %299 = vmatprep.subr.mxu0 0.0
      %300 = vmatpush1.msra.mxu0 %v272
      %301 = vmatprep.subr.mxu0 0.0
      %302 = vmatpush1.msra.mxu0 %v273
      %303 = vmatprep.subr.mxu0 0.0
      %304 = vmatpush1.msra.mxu0 %v274
      %305 = vmatprep.subr.mxu0 0.0
      %306 = vmatpush1.msra.mxu0 %v275
      %307 = vmatprep.subr.mxu0 0.0
      %308 = vmatpush1.msra.mxu0 %v276
      %309 = vmatprep.subr.mxu0 0.0
      %310 = vmatpush1.msra.mxu0 %v277
      %311 = vmatprep.subr.mxu0 0.0
      %312 = vmatpush1.msra.mxu0 %v278
      %313 = vmatprep.subr.mxu0 0.0
      %314 = vmatpush1.msra.mxu0 %v279
      %315 = vmatprep.subr.mxu0 0.0
      %316 = vmatpush1.msra.mxu0 %v280
      %317 = vmatprep.subr.mxu0 0.0
      %318 = vmatpush1.msra.mxu0 %v281
      %319 = vmatprep.subr.mxu0 0.0
      %320 = vmatpush1.msra.mxu0 %v282
      %321 = vmatprep.subr.mxu0 0.0
      %322 = vmatpush1.msra.mxu0 %v283
      %323 = vmatprep.subr.mxu0 0.0
      %324 = vmatpush1.msra.mxu0 0.0
      %325 = vmatprep.subr.mxu0 0.0
      %326 = vmatpush1.msra.mxu0 0.0
      %327 = vmatprep.subr.mxu0 0.0
      %328 = vmatpush1.msra.mxu0 0.0
      %329 = vmatprep.subr.mxu0 0.0
      %330 = vmatpush1.msra.mxu0 0.0
      %331 = vmatprep.subr.mxu0 0.0
      %332 = vmatpush1.msra.mxu0 0.0
      %333 = vmatprep.subr.mxu0 0.0
      %334 = vmatpush1.msra.mxu0 0.0
      %335 = vmatprep.subr.mxu0 0.0
      %336 = vmatpush1.msra.mxu0 0.0
      %337 = vmatprep.subr.mxu0 0.0
      %338 = vmatpush1.msra.mxu0 0.0
      %339 = vmatprep.subr.mxu0 0.0
      %340 = vmatpush1.msra.mxu0 0.0
      %341 = vmatprep.subr.mxu0 0.0
      %342 = vmatpush1.msra.mxu0 0.0
      %343 = vmatprep.subr.mxu0 0.0
      %344 = vmatpush1.msra.mxu0 0.0
      %345 = vmatprep.subr.mxu0 0.0
      %346 = vmatpush1.msra.mxu0 0.0
      %347 = vmatprep.subr.mxu0 0.0
      %348 = vmatpush1.msra.mxu0 0.0
      %349 = vmatprep.subr.mxu0 0.0
      %350 = vmatpush1.msra.mxu0 0.0
      %351 = vmatprep.subr.mxu0 0.0
      %352 = vmatpush1.msra.mxu0 0.0
      %353 = vmatprep.subr.mxu0 0.0
      %354 = vmatpush1.msra.mxu0 0.0
      %355 = vmatprep.mubr.f32.mxu0 0.0
      %356 = vmatmul.mubr.f32.gmra.mrb[0].mxu0 %v266
      %v357 = vpop.f32.mrb[0].mxu0
      %v358 = vadd.f32 %v289, %v357
      %v359 = vpop.f32.mrb[0].mxu0
      %360 = vdwg.mxu0
      %361 = vst [vmem:[%s170 + $0x8] sm:$0xff] %v358
      %v362 = vld [vmem:[%s165 + $0x10] sm:$0xff]
      %s363 = scalar_lea.vmem %s1, 256
      %v364 = vld [vmem:[%s363] sm:$0xff]
      %v365 = vld [vmem:[%s363 + $0x8] sm:$0xff]
      %v366 = vld [vmem:[%s363 + $0x10] sm:$0xff]
      %v367 = vld [vmem:[%s363 + $0x18] sm:$0xff]
      %v368 = vld [vmem:[%s363 + $0x20] sm:$0xff]
      %v369 = vld [vmem:[%s363 + $0x28] sm:$0xff]
      %v370 = vld [vmem:[%s363 + $0x30] sm:$0xff]
      %v371 = vld [vmem:[%s363 + $0x38] sm:$0xff]
      %v372 = vld [vmem:[%s363 + $0x40] sm:$0xff]
      %v373 = vld [vmem:[%s363 + $0x48] sm:$0xff]
      %v374 = vld [vmem:[%s363 + $0x50] sm:$0xff]
      %v375 = vld [vmem:[%s363 + $0x58] sm:$0xff]
      %v376 = vld [vmem:[%s363 + $0x60] sm:$0xff]
      %v377 = vld [vmem:[%s363 + $0x68] sm:$0xff]
      %v378 = vld [vmem:[%s363 + $0x70] sm:$0xff]
      %v379 = vld [vmem:[%s363 + $0x78] sm:$0xff]
      %v380 = vld [vmem:[%s2 + $0x2] sm:$0x1]
      %v382 = vlaneseq
      %v383 = vshrl.u32 %v382, 7
      %v384 = vsub.s32 0, %v383
      %v385 = vrot.slane %v380, %v384
      %387 = vmatprep.subr.mxu0 0.0
      %388 = vmatpush1.msra.mxu0 %v364
      %389 = vmatprep.subr.mxu0 0.0
      %390 = vmatpush1.msra.mxu0 %v365
      %391 = vmatprep.subr.mxu0 0.0
      %392 = vmatpush1.msra.mxu0 %v366
      %393 = vmatprep.subr.mxu0 0.0
      %394 = vmatpush1.msra.mxu0 %v367
      %395 = vmatprep.subr.mxu0 0.0
      %396 = vmatpush1.msra.mxu0 %v368
      %397 = vmatprep.subr.mxu0 0.0
      %398 = vmatpush1.msra.mxu0 %v369
      %399 = vmatprep.subr.mxu0 0.0
      %400 = vmatpush1.msra.mxu0 %v370
      %401 = vmatprep.subr.mxu0 0.0
      %402 = vmatpush1.msra.mxu0 %v371
      %403 = vmatprep.subr.mxu0 0.0
      %404 = vmatpush1.msra.mxu0 %v372
      %405 = vmatprep.subr.mxu0 0.0
      %406 = vmatpush1.msra.mxu0 %v373
      %407 = vmatprep.subr.mxu0 0.0
      %408 = vmatpush1.msra.mxu0 %v374
      %409 = vmatprep.subr.mxu0 0.0
      %410 = vmatpush1.msra.mxu0 %v375
      %411 = vmatprep.subr.mxu0 0.0
      %412 = vmatpush1.msra.mxu0 %v376
      %413 = vmatprep.subr.mxu0 0.0
      %414 = vmatpush1.msra.mxu0 %v377
      %415 = vmatprep.subr.mxu0 0.0
      %416 = vmatpush1.msra.mxu0 %v378
      %417 = vmatprep.subr.mxu0 0.0
      %418 = vmatpush1.msra.mxu0 %v379
      %419 = vmatprep.subr.mxu0 0.0
      %420 = vmatpush1.msra.mxu0 0.0
      %421 = vmatprep.subr.mxu0 0.0
      %422 = vmatpush1.msra.mxu0 0.0
      %423 = vmatprep.subr.mxu0 0.0
      %424 = vmatpush1.msra.mxu0 0.0
      %425 = vmatprep.subr.mxu0 0.0
      %426 = vmatpush1.msra.mxu0 0.0
      %427 = vmatprep.subr.mxu0 0.0
      %428 = vmatpush1.msra.mxu0 0.0
      %429 = vmatprep.subr.mxu0 0.0
      %430 = vmatpush1.msra.mxu0 0.0
      %431 = vmatprep.subr.mxu0 0.0
      %432 = vmatpush1.msra.mxu0 0.0
      %433 = vmatprep.subr.mxu0 0.0
      %434 = vmatpush1.msra.mxu0 0.0
      %435 = vmatprep.subr.mxu0 0.0
      %436 = vmatpush1.msra.mxu0 0.0
      %437 = vmatprep.subr.mxu0 0.0
      %438 = vmatpush1.msra.mxu0 0.0
      %439 = vmatprep.subr.mxu0 0.0
      %440 = vmatpush1.msra.mxu0 0.0
      %441 = vmatprep.subr.mxu0 0.0
      %442 = vmatpush1.msra.mxu0 0.0
      %443 = vmatprep.subr.mxu0 0.0
      %444 = vmatpush1.msra.mxu0 0.0
      %445 = vmatprep.subr.mxu0 0.0
      %446 = vmatpush1.msra.mxu0 0.0
      %447 = vmatprep.subr.mxu0 0.0
      %448 = vmatpush1.msra.mxu0 0.0
      %449 = vmatprep.subr.mxu0 0.0
      %450 = vmatpush1.msra.mxu0 0.0
      %451 = vmatprep.mubr.f32.mxu0 0.0
      %452 = vmatmul.mubr.f32.gmra.mrb[0].mxu0 %v362
      %v453 = vpop.f32.mrb[0].mxu0
      %v454 = vadd.f32 %v385, %v453
      %v455 = vpop.f32.mrb[0].mxu0
      %456 = vdwg.mxu0
      %457 = vst [vmem:[%s170 + $0x10] sm:$0xff] %v454
      %v458 = vld [vmem:[%s165 + $0x18] sm:$0xff]
      %s459 = scalar_lea.vmem %s1, 384
      %v460 = vld [vmem:[%s459] sm:$0xff]
      %v461 = vld [vmem:[%s459 + $0x8] sm:$0xff]
      %v462 = vld [vmem:[%s459 + $0x10] sm:$0xff]
      %v463 = vld [vmem:[%s459 + $0x18] sm:$0xff]
      %v464 = vld [vmem:[%s459 + $0x20] sm:$0xff]
      %v465 = vld [vmem:[%s459 + $0x28] sm:$0xff]
      %v466 = vld [vmem:[%s459 + $0x30] sm:$0xff]
      %v467 = vld [vmem:[%s459 + $0x38] sm:$0xff]
      %v468 = vld [vmem:[%s459 + $0x40] sm:$0xff]
      %v469 = vld [vmem:[%s459 + $0x48] sm:$0xff]
      %v470 = vld [vmem:[%s459 + $0x50] sm:$0xff]
      %v471 = vld [vmem:[%s459 + $0x58] sm:$0xff]
      %v472 = vld [vmem:[%s459 + $0x60] sm:$0xff]
      %v473 = vld [vmem:[%s459 + $0x68] sm:$0xff]
      %v474 = vld [vmem:[%s459 + $0x70] sm:$0xff]
      %v475 = vld [vmem:[%s459 + $0x78] sm:$0xff]
      %v476 = vld [vmem:[%s2 + $0x3] sm:$0x1]
      %v478 = vlaneseq
      %v479 = vshrl.u32 %v478, 7
      %v480 = vsub.s32 0, %v479
      %v481 = vrot.slane %v476, %v480
      %483 = vmatprep.subr.mxu0 0.0
      %484 = vmatpush1.msra.mxu0 %v460
      %485 = vmatprep.subr.mxu0 0.0
      %486 = vmatpush1.msra.mxu0 %v461
      %487 = vmatprep.subr.mxu0 0.0
      %488 = vmatpush1.msra.mxu0 %v462
      %489 = vmatprep.subr.mxu0 0.0
      %490 = vmatpush1.msra.mxu0 %v463
      %491 = vmatprep.subr.mxu0 0.0
      %492 = vmatpush1.msra.mxu0 %v464
      %493 = vmatprep.subr.mxu0 0.0
      %494 = vmatpush1.msra.mxu0 %v465
      %495 = vmatprep.subr.mxu0 0.0
      %496 = vmatpush1.msra.mxu0 %v466
      %497 = vmatprep.subr.mxu0 0.0
      %498 = vmatpush1.msra.mxu0 %v467
      %499 = vmatprep.subr.mxu0 0.0
      %500 = vmatpush1.msra.mxu0 %v468
      %501 = vmatprep.subr.mxu0 0.0
      %502 = vmatpush1.msra.mxu0 %v469
      %503 = vmatprep.subr.mxu0 0.0
      %504 = vmatpush1.msra.mxu0 %v470
      %505 = vmatprep.subr.mxu0 0.0
      %506 = vmatpush1.msra.mxu0 %v471
      %507 = vmatprep.subr.mxu0 0.0
      %508 = vmatpush1.msra.mxu0 %v472
      %509 = vmatprep.subr.mxu0 0.0
      %510 = vmatpush1.msra.mxu0 %v473
      %511 = vmatprep.subr.mxu0 0.0
      %512 = vmatpush1.msra.mxu0 %v474
      %513 = vmatprep.subr.mxu0 0.0
      %514 = vmatpush1.msra.mxu0 %v475
      %515 = vmatprep.subr.mxu0 0.0
      %516 = vmatpush1.msra.mxu0 0.0
      %517 = vmatprep.subr.mxu0 0.0
      %518 = vmatpush1.msra.mxu0 0.0
      %519 = vmatprep.subr.mxu0 0.0
      %520 = vmatpush1.msra.mxu0 0.0
      %521 = vmatprep.subr.mxu0 0.0
      %522 = vmatpush1.msra.mxu0 0.0
      %523 = vmatprep.subr.mxu0 0.0
      %524 = vmatpush1.msra.mxu0 0.0
      %525 = vmatprep.subr.mxu0 0.0
      %526 = vmatpush1.msra.mxu0 0.0
      %527 = vmatprep.subr.mxu0 0.0
      %528 = vmatpush1.msra.mxu0 0.0
      %529 = vmatprep.subr.mxu0 0.0
      %530 = vmatpush1.msra.mxu0 0.0
      %531 = vmatprep.subr.mxu0 0.0
      %532 = vmatpush1.msra.mxu0 0.0
      %533 = vmatprep.subr.mxu0 0.0
      %534 = vmatpush1.msra.mxu0 0.0
      %535 = vmatprep.subr.mxu0 0.0
      %536 = vmatpush1.msra.mxu0 0.0
      %537 = vmatprep.subr.mxu0 0.0
      %538 = vmatpush1.msra.mxu0 0.0
      %539 = vmatprep.subr.mxu0 0.0
      %540 = vmatpush1.msra.mxu0 0.0
      %541 = vmatprep.subr.mxu0 0.0
      %542 = vmatpush1.msra.mxu0 0.0
      %543 = vmatprep.subr.mxu0 0.0
      %544 = vmatpush1.msra.mxu0 0.0
      %545 = vmatprep.subr.mxu0 0.0
      %546 = vmatpush1.msra.mxu0 0.0
      %547 = vmatprep.mubr.f32.mxu0 0.0
      %548 = vmatmul.mubr.f32.gmra.mrb[0].mxu0 %v458
      %v549 = vpop.f32.mrb[0].mxu0
      %v550 = vadd.f32 %v481, %v549
      %v551 = vpop.f32.mrb[0].mxu0
      %552 = vdwg.mxu0
      %553 = vst [vmem:[%s170 + $0x18] sm:$0xff] %v550
      %p554 = scmp.lt.s32.totalorder %s14, 1
      %s555 = scalar_select %p554, %s14, 1
      %s556 = smul.addr %s555, 4
      %s557 = smul.addr %s556, 8
      %s558 = scalar_lea.vmem %s3, %s557
      // Predicated region
      $region33: #{grouped_linear.1} parent=31 // pred_check
        %p559 = pneg %p100
      $region34: #{grouped_linear.1} parent=31 // pred_check_branch
        %561 = sbr.rel (%p559) target = $region36
      $region35: #{grouped_linear.1} parent=31 // pred_region
        _
      $region36: #{grouped_linear.1} parent=31 // pred_fallthru
        _
    $region32: #{grouped_linear.1} parent=5 // pred_fallthru
      _
    %p562 = scmp.le.s32.totalorder 2, %s9
    // Predicated region
    $region37: #{grouped_linear.1} parent=5 // pred_check
      %p563 = pneg %p562
    $region38: #{grouped_linear.1} parent=5 // pred_check_branch
      %565 = sbr.rel (%p563) target = $region40
    $region39: #{grouped_linear.1} parent=5 // pred_region
      %s566 = ssub.s32 %s9, 2
      // Predicated region
      $region41: #{grouped_linear.1} parent=39 // pred_check
        %p567 = pneg %p106
      $region42: #{grouped_linear.1} parent=39 // pred_check_branch
        %569 = sbr.rel (%p567) target = $region44
      $region43: #{grouped_linear.1} parent=39 // pred_region
        %p570 = scmp.lt.s32.totalorder %s15, 1
        %s571 = scalar_select %p570, %s15, 1
        %s572 = smul.addr %s571, 4
        %s573 = smul.addr %s572, 8
        %s574 = scalar_lea.vmem %s3, %s573
      $region44: #{grouped_linear.1} parent=39 // pred_fallthru
        _
    $region40: #{grouped_linear.1} parent=5 // pred_fallthru
      _
  $region6: #{grouped_linear.1} parent=0 // loop_footer
    %s13 = sadd.s32 1, %s9
  $region7: #{grouped_linear.1} parent=0 // loop_footer_branch
    %8 = sbr.rel target = $region3
  $region8: #{grouped_linear.1} parent=0 // loop_exit
    _

</llo_original>
